<compile_context>
chip_gen: v6e
topology: v6e:2x2x1
jax: 0.10.0
libtpu: 0.0.40
codegen_flags: <defaults>
</compile_context>

<pallas_src>
import functools

import jax
import jax.numpy as jnp
from jax import lax
from jax.experimental import pallas as pl
from jax.experimental.pallas import tpu as pltpu


# ------------------------------ helpers -------------------------------------

def _round_up(n, m):
    return ((n + m - 1) // m) * m


# W[out, in] @ h[in, TB]  -> (out, TB)
_CONTRACT_LAST_FIRST = (((1,), (0,)), ((), ()))
# W[out, in] . x[TB, in] -> (out, TB)   (first layer; x stays batch-major)
_CONTRACT_LAST_LAST = (((1,), (1,)), ((), ()))


def _dense_t(w, h, b, dims, mm):
    """Lane-dense linear layer: (out, TB) = W @ h + b, f32 accumulation."""
    return lax.dot_general(w, h.astype(mm), dimension_numbers=dims,
                           preferred_element_type=jnp.float32) + b


def _greedy_epilogue(q_t, q_t_ref, maxq_ref, act_ref):
    """Fused greedy-policy outputs from the transposed Q tile.

    q_t: (A_pad, TB) f32 — actions on sublanes, batch tile on lanes.  Padded
    action rows carry -inf (from the padded bias) so they never win.
    """
    q_t_ref[...] = q_t
    maxq = jnp.max(q_t, axis=0, keepdims=True)                      # (1, TB)
    ids = lax.broadcasted_iota(jnp.int32, q_t.shape, 0)             # (A_pad, TB)
    act = jnp.min(jnp.where(q_t == maxq, ids, q_t.shape[0]),
                  axis=0, keepdims=True)                            # (1, TB)
    maxq_ref[...] = maxq
    act_ref[...] = act.astype(jnp.int32)


# ----------------------------- Pallas kernels -------------------------------

def _qnet_deep_kernel(x_ref, w1_ref, b1_ref, w2_ref, b2_ref, w3_ref, b3_ref,
                      wo_ref, bo_ref, q_t_ref, maxq_ref, act_ref,
                      *, matmul_dtype):
    mm = matmul_dtype
    x = x_ref[...]                                                   # (TB, F)
    h = _dense_t(w1_ref[...], x, b1_ref[...], _CONTRACT_LAST_LAST, mm)   # (H, TB)
    h = jnp.maximum(h, 0.0)
    h = _dense_t(w2_ref[...], h, b2_ref[...], _CONTRACT_LAST_FIRST, mm)
    h = jnp.maximum(h, 0.0)
    h = _dense_t(w3_ref[...], h, b3_ref[...], _CONTRACT_LAST_FIRST, mm)
    h = jnp.tanh(h)
    q_t = _dense_t(wo_ref[...], h, bo_ref[...], _CONTRACT_LAST_FIRST, mm)  # (A_pad, TB)
    _greedy_epilogue(q_t, q_t_ref, maxq_ref, act_ref)


def _qnet_cartpole_kernel(x_ref, w1_ref, b1_ref, wo_ref, bo_ref,
                          q_t_ref, maxq_ref, act_ref, *, matmul_dtype):
    mm = matmul_dtype
    x = x_ref[...]
    h = _dense_t(w1_ref[...], x, b1_ref[...], _CONTRACT_LAST_LAST, mm)
    h = jnp.maximum(h, 0.0)
    q_t = _dense_t(wo_ref[...], h, bo_ref[...], _CONTRACT_LAST_FIRST, mm)
    _greedy_epilogue(q_t, q_t_ref, maxq_ref, act_ref)


# ------------------------------ Param init ----------------------------------

def _xavier_normal(key, fan_out, fan_in):
    std = (2.0 / (fan_in + fan_out)) ** 0.5
    # PyTorch layout: [out, in]; xavier_normal std is symmetric in the fans.
    return std * jax.random.normal(key, (fan_out, fan_in), dtype=jnp.float32)


def init_qnetwork_params(environment_name, input_dim, n_actions, key):
    params = {}
    if environment_name == 'CartPole-v0':
        k1, k2 = jax.random.split(key, 2)
        params['w1'] = _xavier_normal(k1, 32, input_dim)
        params['b1'] = jnp.zeros((32,), jnp.float32)
        params['wo'] = _xavier_normal(k2, n_actions, 32)
        params['bo'] = jnp.zeros((n_actions,), jnp.float32)
    else:
        k1, k2, k3, k4 = jax.random.split(key, 4)
        params['w1'] = _xavier_normal(k1, 64, input_dim)
        params['b1'] = jnp.zeros((64,), jnp.float32)
        params['w2'] = _xavier_normal(k2, 64, 64)
        params['b2'] = jnp.zeros((64,), jnp.float32)
        params['w3'] = _xavier_normal(k3, 64, 64)
        params['b3'] = jnp.zeros((64,), jnp.float32)
        params['wo'] = _xavier_normal(k4, n_actions, 64)
        params['bo'] = jnp.zeros((n_actions,), jnp.float32)
    return params


# -------------------------------- Wrapper ------------------------------------

def qnetwork_forward(environment_name, x, params, *, block_b=2048,
                     use_bf16_matmul=False, return_q=True):
    """Pallas forward pass of QNetwork.

    Args:
      x: [B, F] observations (any float dtype; cast to f32 like X.float()).
      block_b: batch-tile target (sweep 2048-8192 for replay-buffer batches).
        Tiles are rounded to multiples of 128 once B > 128 (lane-dense output
        stores) and capped so B >= 256 yields at least 2 grid steps (v7x).
      use_bf16_matmul: cast MXU operands to bf16 (weights pre-cast in the
        wrapper, activations in-kernel) with f32 accumulation.  Keep False on
        v5e (no bf16 VPU path).
      return_q: if False, skip the wrapper-side q transpose and return only
        the fused greedy-policy outputs (max_q, action).

    Returns (q, max_q, greedy_action):
      q:      [B, n_actions] f32, or None if return_q=False
      max_q:  [B] f32   (fused max over actions, for TD targets)
      action: [B] int32 (fused argmax over actions, greedy policy)
    """
    x = jnp.asarray(x, jnp.float32)
    B, F = x.shape
    A, H = params['wo'].shape[0], params['w1'].shape[0]
    is_cartpole = (environment_name == 'CartPole-v0')

    # ---- batch tiling: pipeline over the batch, weights VMEM-resident ------
    if B <= 128:
        tb = _round_up(max(B, 1), 8)              # single tile, full-dim block
    else:
        tb = _round_up(min(block_b, _round_up(B, 128)), 128)
        if B >= 256:                               # >= 2 grid steps for v7x
            tb = min(tb, _round_up(pl.cdiv(B, 2), 128))
    b_pad = _round_up(B, tb)                       # output padded; x is NOT padded
    grid = (b_pad // tb,)

    # ---- pad action dim to a full sublane group (zero W rows, -inf bias) ---
    a_pad = _round_up(A, 8)
    wo = params['wo']
    bo = params['bo'].reshape(A, 1)
    if a_pad != A:
        wo = jnp.concatenate([wo, jnp.zeros((a_pad - A, H), jnp.float32)], axis=0)
        bo = jnp.concatenate(
            [bo, jnp.full((a_pad - A, 1), -jnp.inf, jnp.float32)], axis=0)

    mm = jnp.bfloat16 if use_bf16_matmul else jnp.float32

    def wcast(w):   # pre-cast weights in the wrapper (real DMA saving for bf16)
        return w.astype(mm)

    if is_cartpole:
        kernel = functools.partial(_qnet_cartpole_kernel, matmul_dtype=mm)
        operands = (wcast(params['w1']), params['b1'].reshape(H, 1),
                    wcast(wo), bo)
    else:
        kernel = functools.partial(_qnet_deep_kernel, matmul_dtype=mm)
        operands = (wcast(params['w1']), params['b1'].reshape(H, 1),
                    wcast(params['w2']), params['b2'].reshape(H, 1),
                    wcast(params['w3']), params['b3'].reshape(H, 1),
                    wcast(wo), bo)

    in_specs = [pl.BlockSpec((tb, F), lambda i: (i, 0))]
    for w in operands:
        # Constant index_map -> stays resident in VMEM across all batch tiles.
        in_specs.append(pl.BlockSpec(w.shape, lambda i: (0, 0)))

    out_shape = (jax.ShapeDtypeStruct((a_pad, b_pad), jnp.float32),
                 jax.ShapeDtypeStruct((1, b_pad), jnp.float32),
                 jax.ShapeDtypeStruct((1, b_pad), jnp.int32))
    out_specs = (pl.BlockSpec((a_pad, tb), lambda i: (0, i)),
                 pl.BlockSpec((1, tb), lambda i: (0, i)),
                 pl.BlockSpec((1, tb), lambda i: (0, i)))

    # Advisory cost estimate so XLA schedules this small call sensibly.
    if is_cartpole:
        flops = 2 * b_pad * (F * H + H * a_pad)
        transcendentals = 0
    else:
        flops = 2 * b_pad * (F * H + 2 * H * H + H * a_pad)
        transcendentals = b_pad * H                      # tanh
    bytes_accessed = (4 * B * F
                      + sum(int(w.size) * int(w.dtype.itemsize) for w in operands)
                      + 4 * b_pad * (a_pad + 2))

    q_t, maxq, act = pl.pallas_call(
        kernel,
        grid=grid,
        in_specs=in_specs,
        out_specs=out_specs,
        out_shape=out_shape,
        compiler_params=pltpu.CompilerParams(
            dimension_semantics=("parallel",),   # shard batch tiles across TCs
        ),
        cost_estimate=pl.CostEstimate(flops=flops,
                                      transcendentals=transcendentals,
                                      bytes_accessed=bytes_accessed),
    )(x, *operands)

    maxq_out = maxq[0, :B]
    act_out = act[0, :B]
    if not return_q:
        return None, maxq_out, act_out
    # Back to PyTorch layout: tiny (A, B) slice + transpose in the wrapper.
    q = q_t[:A, :B].T
    return q, maxq_out, act_out


# Pure-JAX reference (same math as QNetwork.forward) for sanity checks.
def qnetwork_reference(environment_name, x, params):
    x = x.astype(jnp.float32)
    if environment_name == 'CartPole-v0':
        h = jax.nn.relu(x @ params['w1'].T + params['b1'])
    else:
        h = jax.nn.relu(x @ params['w1'].T + params['b1'])
        h = jax.nn.relu(h @ params['w2'].T + params['b2'])
        h = jnp.tanh(h @ params['w3'].T + params['b3'])
    return h @ params['wo'].T + params['bo']


# TODO(synk): optimizer (Adam) step and checkpoint save/load are training-side
# host logic, not part of the forward pass, and are not translated.


# ---------------------------------- Main -------------------------------------

if __name__ == "__main__":
    key = jax.random.PRNGKey(0)
    kp_deep, kp_cart, kx1, kx2, kx3, kx4 = jax.random.split(key, 6)

    # --- non-CartPole branch (LunarLander-like): obs=8, 4 actions, batch=8 ---
    env_deep = "LunarLander-v2"
    B, F_deep, A_deep = 8, 8, 4
    params_deep = init_qnetwork_params(env_deep, F_deep, A_deep, kp_deep)
    x_small = jax.random.normal(kx1, (B, F_deep), dtype=jnp.float32)

    q, maxq, act = qnetwork_forward(env_deep, x_small, params_deep)
    q = jax.block_until_ready(q)
    q_ref = qnetwork_reference(env_deep, x_small, params_deep)
    assert q.shape == (B, A_deep)
    assert jnp.allclose(q, q_ref, atol=1e-5, rtol=1e-5)
    assert jnp.array_equal(act, jnp.argmax(q, axis=1).astype(jnp.int32))
    assert jnp.allclose(maxq, jnp.max(q, axis=1), atol=1e-6)

    # --- larger batch: multi-tile grid with a ragged edge (no jnp.pad of x) --
    B_big = 300
    x_big = jax.random.normal(kx2, (B_big, F_deep), dtype=jnp.float32)
    q_b, maxq_b, act_b = qnetwork_forward(env_deep, x_big, params_deep)
    q_b = jax.block_until_ready(q_b)
    q_b_ref = qnetwork_reference(env_deep, x_big, params_deep)
    assert q_b.shape == (B_big, A_deep)
    assert jnp.allclose(q_b, q_b_ref, atol=1e-5, rtol=1e-5)
    assert jnp.array_equal(act_b, jnp.argmax(q_b, axis=1).astype(jnp.int32))
    assert jnp.allclose(maxq_b, jnp.max(q_b, axis=1), atol=1e-6)

    # --- policy-only path (no q output / no wrapper transpose) --------------
    _, maxq_p, act_p = qnetwork_forward(env_deep, x_big, params_deep,
                                        return_q=False)
    jax.block_until_ready(act_p)
    assert jnp.array_equal(act_p, act_b)
    assert jnp.allclose(maxq_p, maxq_b)

    # --- tiny ragged batch (B < 8): single partial tile ----------------------
    B_tiny = 5
    x_tiny = jax.random.normal(kx3, (B_tiny, F_deep), dtype=jnp.float32)
    q_t5, maxq_t5, act_t5 = qnetwork_forward(env_deep, x_tiny, params_deep)
    q_t5 = jax.block_until_ready(q_t5)
    q_t5_ref = qnetwork_reference(env_deep, x_tiny, params_deep)
    assert q_t5.shape == (B_tiny, A_deep)
    assert jnp.allclose(q_t5, q_t5_ref, atol=1e-5, rtol=1e-5)
    assert jnp.array_equal(act_t5, jnp.argmax(q_t5, axis=1).astype(jnp.int32))

    # --- bf16 MXU-operand path (v6e/v7x optimization), loose tolerance ------
    q_bf, _, _ = qnetwork_forward(env_deep, x_big, params_deep,
                                  use_bf16_matmul=True)
    q_bf = jax.block_until_ready(q_bf)
    assert jnp.allclose(q_bf, q_b_ref, atol=5e-2, rtol=5e-2)

    # --- CartPole-v0 branch: obs=4, 2 actions, batch=8 -----------------------
    env_cart = "CartPole-v0"
    F_cart, A_cart = 4, 2
    params_cart = init_qnetwork_params(env_cart, F_cart, A_cart, kp_cart)
    x_cart = jax.random.normal(kx4, (B, F_cart), dtype=jnp.float32)
    q_c, maxq_c, act_c = qnetwork_forward(env_cart, x_cart, params_cart)
    q_c = jax.block_until_ready(q_c)
    q_c_ref = qnetwork_reference(env_cart, x_cart, params_cart)
    assert q_c.shape == (B, A_cart)
    assert jnp.allclose(q_c, q_c_ref, atol=1e-5, rtol=1e-5)
    assert jnp.array_equal(act_c, jnp.argmax(q_c, axis=1).astype(jnp.int32))
    assert jnp.allclose(maxq_c, jnp.max(q_c, axis=1), atol=1e-6)

    print("KERNEL_OK")
</pallas_src>

<mosaic_0001>
module attributes {stable_mosaic.version = 11 : i64} {
  func.func @_qnet_deep_kernel(%arg0: i32, %arg1: memref<8x8xf32, #tpu.memory_space<vmem>>, %arg2: memref<64x8xf32, #tpu.memory_space<vmem>>, %arg3: memref<64x1xf32, #tpu.memory_space<vmem>>, %arg4: memref<64x64xf32, #tpu.memory_space<vmem>>, %arg5: memref<64x1xf32, #tpu.memory_space<vmem>>, %arg6: memref<64x64xf32, #tpu.memory_space<vmem>>, %arg7: memref<64x1xf32, #tpu.memory_space<vmem>>, %arg8: memref<8x64xf32, #tpu.memory_space<vmem>>, %arg9: memref<8x1xf32, #tpu.memory_space<vmem>>, %arg10: memref<8x8xf32, #tpu.memory_space<vmem>>, %arg11: memref<1x8xf32, #tpu.memory_space<vmem>>, %arg12: memref<1x8xi32, #tpu.memory_space<vmem>>) attributes {dimension_semantics = [#tpu.dimension_semantics<parallel>], iteration_bounds = array<i64: 1>, scalar_prefetch = 0 : i64, scratch_operands = 0 : i64, tpu.core_type = #tpu.core_type<tc>, window_params = [{transform_indices = @transform_0, window_bounds = array<i64: 8, 8>}, {pipeline_mode = #tpu.pipeline_mode<synchronous>, transform_indices = @transform_1, window_bounds = array<i64: 64, 8>}, {pipeline_mode = #tpu.pipeline_mode<synchronous>, transform_indices = @transform_2, window_bounds = array<i64: 64, 1>}, {pipeline_mode = #tpu.pipeline_mode<synchronous>, transform_indices = @transform_3, window_bounds = array<i64: 64, 64>}, {pipeline_mode = #tpu.pipeline_mode<synchronous>, transform_indices = @transform_4, window_bounds = array<i64: 64, 1>}, {pipeline_mode = #tpu.pipeline_mode<synchronous>, transform_indices = @transform_5, window_bounds = array<i64: 64, 64>}, {pipeline_mode = #tpu.pipeline_mode<synchronous>, transform_indices = @transform_6, window_bounds = array<i64: 64, 1>}, {pipeline_mode = #tpu.pipeline_mode<synchronous>, transform_indices = @transform_7, window_bounds = array<i64: 8, 64>}, {pipeline_mode = #tpu.pipeline_mode<synchronous>, transform_indices = @transform_8, window_bounds = array<i64: 8, 1>}, {transform_indices = @transform_9, window_bounds = array<i64: 8, 8>}, {transform_indices = @transform_10, window_bounds = array<i64: 1, 8>}, {transform_indices = @transform_11, window_bounds = array<i64: 1, 8>}]} {
    %c0 = arith.constant 0 : index
    %c0_0 = arith.constant 0 : index
    %0 = vector.load %arg1[%c0, %c0_0] : memref<8x8xf32, #tpu.memory_space<vmem>>, vector<8x8xf32>
    %c0_1 = arith.constant 0 : index
    %c0_2 = arith.constant 0 : index
    %1 = vector.load %arg2[%c0_1, %c0_2] : memref<64x8xf32, #tpu.memory_space<vmem>>, vector<64x8xf32>
    %c0_3 = arith.constant 0 : index
    %c0_4 = arith.constant 0 : index
    %2 = vector.load %arg3[%c0_3, %c0_4] : memref<64x1xf32, #tpu.memory_space<vmem>>, vector<64x1xf32>
    %cst = arith.constant dense<0.000000e+00> : vector<64x8xf32>
    %3 = tpu.matmul %1, %0, %cst {dimension_numbers = #tpu.dot_dimension_numbers<[1], [1], [0], [0], [0, 0, 1, 0], [], []>} : vector<64x8xf32>, vector<8x8xf32>, vector<64x8xf32> -> vector<64x8xf32>
    %4 = vector.broadcast %2 : vector<64x1xf32> to vector<64x8xf32>
    %5 = arith.addf %3, %4 : vector<64x8xf32>
    %cst_5 = arith.constant 0.000000e+00 : f32
    %6 = vector.broadcast %cst_5 : f32 to vector<64x8xf32>
    %7 = arith.maximumf %5, %6 : vector<64x8xf32>
    %c0_6 = arith.constant 0 : index
    %c0_7 = arith.constant 0 : index
    %8 = vector.load %arg4[%c0_6, %c0_7] : memref<64x64xf32, #tpu.memory_space<vmem>>, vector<64x64xf32>
    %c0_8 = arith.constant 0 : index
    %c0_9 = arith.constant 0 : index
    %9 = vector.load %arg5[%c0_8, %c0_9] : memref<64x1xf32, #tpu.memory_space<vmem>>, vector<64x1xf32>
    %cst_10 = arith.constant dense<0.000000e+00> : vector<64x8xf32>
    %10 = tpu.matmul %8, %7, %cst_10 {dimension_numbers = #tpu.dot_dimension_numbers<[1], [0], [0], [1], [0, 0, 1, 1], [], []>} : vector<64x64xf32>, vector<64x8xf32>, vector<64x8xf32> -> vector<64x8xf32>
    %11 = vector.broadcast %9 : vector<64x1xf32> to vector<64x8xf32>
    %12 = arith.addf %10, %11 : vector<64x8xf32>
    %cst_11 = arith.constant 0.000000e+00 : f32
    %13 = vector.broadcast %cst_11 : f32 to vector<64x8xf32>
    %14 = arith.maximumf %12, %13 : vector<64x8xf32>
    %c0_12 = arith.constant 0 : index
    %c0_13 = arith.constant 0 : index
    %15 = vector.load %arg6[%c0_12, %c0_13] : memref<64x64xf32, #tpu.memory_space<vmem>>, vector<64x64xf32>
    %c0_14 = arith.constant 0 : index
    %c0_15 = arith.constant 0 : index
    %16 = vector.load %arg7[%c0_14, %c0_15] : memref<64x1xf32, #tpu.memory_space<vmem>>, vector<64x1xf32>
    %cst_16 = arith.constant dense<0.000000e+00> : vector<64x8xf32>
    %17 = tpu.matmul %15, %14, %cst_16 {dimension_numbers = #tpu.dot_dimension_numbers<[1], [0], [0], [1], [0, 0, 1, 1], [], []>} : vector<64x64xf32>, vector<64x8xf32>, vector<64x8xf32> -> vector<64x8xf32>
    %18 = vector.broadcast %16 : vector<64x1xf32> to vector<64x8xf32>
    %19 = arith.addf %17, %18 : vector<64x8xf32>
    %20 = math.tanh %19 : vector<64x8xf32>
    %c0_17 = arith.constant 0 : index
    %c0_18 = arith.constant 0 : index
    %21 = vector.load %arg8[%c0_17, %c0_18] : memref<8x64xf32, #tpu.memory_space<vmem>>, vector<8x64xf32>
    %c0_19 = arith.constant 0 : index
    %c0_20 = arith.constant 0 : index
    %22 = vector.load %arg9[%c0_19, %c0_20] : memref<8x1xf32, #tpu.memory_space<vmem>>, vector<8x1xf32>
    %cst_21 = arith.constant dense<0.000000e+00> : vector<8x8xf32>
    %23 = tpu.matmul %21, %20, %cst_21 {dimension_numbers = #tpu.dot_dimension_numbers<[1], [0], [0], [1], [0, 0, 1, 1], [], []>} : vector<8x64xf32>, vector<64x8xf32>, vector<8x8xf32> -> vector<8x8xf32>
    %24 = vector.broadcast %22 : vector<8x1xf32> to vector<8x8xf32>
    %25 = arith.addf %23, %24 : vector<8x8xf32>
    %c0_22 = arith.constant 0 : index
    %c0_23 = arith.constant 0 : index
    %26 = vector.load %arg10[%c0_22, %c0_23] : memref<8x8xf32, #tpu.memory_space<vmem>>, vector<8x8xf32>
    tpu.vector_store %arg10[%c0_22, %c0_23], %25 {strides = array<i32>} : memref<8x8xf32, #tpu.memory_space<vmem>>, vector<8x8xf32>,
    %cst_24 = arith.constant dense<0xFF800000> : vector<8xf32>
    %27 = vector.multi_reduction <maximumf>, %25, %cst_24 [0] : vector<8x8xf32> to vector<8xf32>
    %28 = vector.shape_cast %27 : vector<8xf32> to vector<1x8xf32>
    %29 = tpu.iota {dimensions = array<i32: 0>} : vector<8x8xi32>
    %30 = vector.broadcast %28 : vector<1x8xf32> to vector<8x8xf32>
    %31 = arith.cmpf oeq, %25, %30 : vector<8x8xf32>
    %c8_i32 = arith.constant 8 : i32
    %32 = vector.broadcast %c8_i32 : i32 to vector<8x8xi32>
    %33 = arith.select %31, %29, %32 : vector<8x8xi1>, vector<8x8xi32>
    %cst_25 = arith.constant dense<2147483647> : vector<8xi32>
    %34 = vector.multi_reduction <minsi>, %33, %cst_25 [0] : vector<8x8xi32> to vector<8xi32>
    %35 = vector.shape_cast %34 : vector<8xi32> to vector<1x8xi32>
    %c0_26 = arith.constant 0 : index
    %c0_27 = arith.constant 0 : index
    %36 = vector.load %arg11[%c0_26, %c0_27] : memref<1x8xf32, #tpu.memory_space<vmem>>, vector<1x8xf32>
    tpu.vector_store %arg11[%c0_26, %c0_27], %28 {strides = array<i32>} : memref<1x8xf32, #tpu.memory_space<vmem>>, vector<1x8xf32>,
    %c0_28 = arith.constant 0 : index
    %c0_29 = arith.constant 0 : index
    %37 = vector.load %arg12[%c0_28, %c0_29] : memref<1x8xi32, #tpu.memory_space<vmem>>, vector<1x8xi32>
    tpu.vector_store %arg12[%c0_28, %c0_29], %35 {strides = array<i32>} : memref<1x8xi32, #tpu.memory_space<vmem>>, vector<1x8xi32>,
    return
  }
  func.func @transform_0(%arg0: i32) -> (i32, i32) {
    %c0_i32 = arith.constant 0 : i32
    %c0_i32_0 = arith.constant 0 : i32
    return %arg0, %c0_i32 : i32, i32
  }
  func.func @transform_1(%arg0: i32) -> (i32, i32) {
    %c0_i32 = arith.constant 0 : i32
    %c0_i32_0 = arith.constant 0 : i32
    %c0_i32_1 = arith.constant 0 : i32
    return %c0_i32, %c0_i32_0 : i32, i32
  }
  func.func @transform_2(%arg0: i32) -> (i32, i32) {
    %c0_i32 = arith.constant 0 : i32
    %c0_i32_0 = arith.constant 0 : i32
    %c0_i32_1 = arith.constant 0 : i32
    return %c0_i32, %c0_i32_0 : i32, i32
  }
  func.func @transform_3(%arg0: i32) -> (i32, i32) {
    %c0_i32 = arith.constant 0 : i32
    %c0_i32_0 = arith.constant 0 : i32
    %c0_i32_1 = arith.constant 0 : i32
    return %c0_i32, %c0_i32_0 : i32, i32
  }
  func.func @transform_4(%arg0: i32) -> (i32, i32) {
    %c0_i32 = arith.constant 0 : i32
    %c0_i32_0 = arith.constant 0 : i32
    %c0_i32_1 = arith.constant 0 : i32
    return %c0_i32, %c0_i32_0 : i32, i32
  }
  func.func @transform_5(%arg0: i32) -> (i32, i32) {
    %c0_i32 = arith.constant 0 : i32
    %c0_i32_0 = arith.constant 0 : i32
    %c0_i32_1 = arith.constant 0 : i32
    return %c0_i32, %c0_i32_0 : i32, i32
  }
  func.func @transform_6(%arg0: i32) -> (i32, i32) {
    %c0_i32 = arith.constant 0 : i32
    %c0_i32_0 = arith.constant 0 : i32
    %c0_i32_1 = arith.constant 0 : i32
    return %c0_i32, %c0_i32_0 : i32, i32
  }
  func.func @transform_7(%arg0: i32) -> (i32, i32) {
    %c0_i32 = arith.constant 0 : i32
    %c0_i32_0 = arith.constant 0 : i32
    %c0_i32_1 = arith.constant 0 : i32
    return %c0_i32, %c0_i32_0 : i32, i32
  }
  func.func @transform_8(%arg0: i32) -> (i32, i32) {
    %c0_i32 = arith.constant 0 : i32
    %c0_i32_0 = arith.constant 0 : i32
    %c0_i32_1 = arith.constant 0 : i32
    return %c0_i32, %c0_i32_0 : i32, i32
  }
  func.func @transform_9(%arg0: i32) -> (i32, i32) {
    %c0_i32 = arith.constant 0 : i32
    %c0_i32_0 = arith.constant 0 : i32
    return %c0_i32, %arg0 : i32, i32
  }
  func.func @transform_10(%arg0: i32) -> (i32, i32) {
    %c0_i32 = arith.constant 0 : i32
    %c0_i32_0 = arith.constant 0 : i32
    return %c0_i32, %arg0 : i32, i32
  }
  func.func @transform_11(%arg0: i32) -> (i32, i32) {
    %c0_i32 = arith.constant 0 : i32
    %c0_i32_0 = arith.constant 0 : i32
    return %c0_i32, %arg0 : i32, i32
  }
}

</mosaic_0001>

<llo_original>
// kernel: tpu_custom_call.1
$region0: #{tpu_custom_call.1}
  #allocation0 [shape = 'u32[]', space=smem, size = 0x4, offset = 0x4, fixed_abs, tag = 'smem constant byte address 0x4 - core index']
  #allocation1 [shape = 'u32[144,128]{1,0:T(1,128)}', space=vmem, size = 0x12000, scoped, tag = 'internal scratch']
  %s0 = inlined_call_operand.vmem [shape: f32[8,8], index: 0, kind: input, shape index: {}]
  %s1 = inlined_call_operand.vmem [shape: f32[64,8], index: 1, kind: input, shape index: {}]
  %s2 = inlined_call_operand.vmem [shape: f32[64,1], index: 2, kind: input, shape index: {}]
  %s3 = inlined_call_operand.vmem [shape: f32[64,64], index: 3, kind: input, shape index: {}]
  %s4 = inlined_call_operand.vmem [shape: f32[64,1], index: 4, kind: input, shape index: {}]
  %s5 = inlined_call_operand.vmem [shape: f32[64,64], index: 5, kind: input, shape index: {}]
  %s6 = inlined_call_operand.vmem [shape: f32[64,1], index: 6, kind: input, shape index: {}]
  %s7 = inlined_call_operand.vmem [shape: f32[8,64], index: 7, kind: input, shape index: {}]
  %s8 = inlined_call_operand.vmem [shape: f32[8,1], index: 8, kind: input, shape index: {}]
  %s9 = inlined_call_operand.hbm [shape: f32[8,8], index: 9, kind: output, shape index: {0}]
  %s10 = inlined_call_operand.hbm [shape: f32[1,8], index: 10, kind: output, shape index: {1}]
  %s11 = inlined_call_operand.hbm [shape: s32[1,8], index: 11, kind: output, shape index: {2}]
  %12 = xla_tuple %s9, %s10, %s11
  %s13 = sld [smem:[#allocation0]]
  $region62: #{tpu_custom_call.1} parent=0
    _
  %s15 = ssub.s32 1, %s13
  %s16 = scalar_select 0, %s15, %s13
  $region1: #{tpu_custom_call.1} parent=0
    #allocation2 [shape = 'u8[4096]{0}', space=vmem, size = 0x1000, scoped, tag = 'output window, operand 0, single buffered']
    #allocation3 [shape = 's32[1]{0}', space=sflag, size = 0x4, scoped, tag = 'scoped memory for tpu_custom_call.1']
    #allocation4 [shape = 'u8[512]{0}', space=vmem, size = 0x400, scoped, tag = 'output window, operand 1, single buffered']
    #allocation5 [shape = 's32[1]{0}', space=sflag, size = 0x4, scoped, tag = 'scoped memory for tpu_custom_call.1']
    #allocation6 [shape = 'u8[512]{0}', space=vmem, size = 0x400, scoped, tag = 'output window, operand 2, single buffered']
    %17 = vsyncpa [#allocation3], 0
    %18 = vsyncpa [#allocation5], 0
    // Predicated region
    $region2: #{tpu_custom_call.1} parent=1 // pred_check
      _
    $region3: #{tpu_custom_call.1} parent=1 // pred_check_branch
      %20 = sbr.rel (0) target = $region5
    $region4: #{tpu_custom_call.1} parent=1 // pred_region
      _
    $region5: #{tpu_custom_call.1} parent=1 // pred_fallthru
      _
    // Predicated region
    $region6: #{tpu_custom_call.1} parent=1 // pred_check
      _
    $region7: #{tpu_custom_call.1} parent=1 // pred_check_branch
      %22 = sbr.rel (0) target = $region9
    $region8: #{tpu_custom_call.1} parent=1 // pred_region
      _
    $region9: #{tpu_custom_call.1} parent=1 // pred_fallthru
      _
    // Predicated region
    $region10: #{tpu_custom_call.1} parent=1 // pred_check
      _
    $region11: #{tpu_custom_call.1} parent=1 // pred_check_branch
      %24 = sbr.rel (0) target = $region13
    $region12: #{tpu_custom_call.1} parent=1 // pred_region
      _
    $region13: #{tpu_custom_call.1} parent=1 // pred_fallthru
      _
    // Predicated region
    $region14: #{tpu_custom_call.1} parent=1 // pred_check
      _
    $region15: #{tpu_custom_call.1} parent=1 // pred_check_branch
      %26 = sbr.rel (0) target = $region17
    $region16: #{tpu_custom_call.1} parent=1 // pred_region
      _
    $region17: #{tpu_custom_call.1} parent=1 // pred_fallthru
      _
    // Predicated region
    $region18: #{tpu_custom_call.1} parent=1 // pred_check
      _
    $region19: #{tpu_custom_call.1} parent=1 // pred_check_branch
      %28 = sbr.rel (0) target = $region21
    $region20: #{tpu_custom_call.1} parent=1 // pred_region
      _
    $region21: #{tpu_custom_call.1} parent=1 // pred_fallthru
      _
    // Predicated region
    $region22: #{tpu_custom_call.1} parent=1 // pred_check
      _
    $region23: #{tpu_custom_call.1} parent=1 // pred_check_branch
      %30 = sbr.rel (0) target = $region25
    $region24: #{tpu_custom_call.1} parent=1 // pred_region
      _
    $region25: #{tpu_custom_call.1} parent=1 // pred_fallthru
      _
    // Predicated region
    $region26: #{tpu_custom_call.1} parent=1 // pred_check
      _
    $region27: #{tpu_custom_call.1} parent=1 // pred_check_branch
      %32 = sbr.rel (0) target = $region29
    $region28: #{tpu_custom_call.1} parent=1 // pred_region
      _
    $region29: #{tpu_custom_call.1} parent=1 // pred_fallthru
      _
    // Predicated region
    $region30: #{tpu_custom_call.1} parent=1 // pred_check
      _
    $region31: #{tpu_custom_call.1} parent=1 // pred_check_branch
      %34 = sbr.rel (0) target = $region33
    $region32: #{tpu_custom_call.1} parent=1 // pred_region
      _
    $region33: #{tpu_custom_call.1} parent=1 // pred_fallthru
      _
    // Predicated region
    $region34: #{tpu_custom_call.1} parent=1 // pred_check
      _
    $region35: #{tpu_custom_call.1} parent=1 // pred_check_branch
      %36 = sbr.rel (0) target = $region37
    $region36: #{tpu_custom_call.1} parent=1 // pred_region
      _
    $region37: #{tpu_custom_call.1} parent=1 // pred_fallthru
      _
    %v37 = vld [vmem:[%s0] sm:$0xff]
    %v38 = vld [vmem:[%s1] sm:$0xff]
    %v39 = vld [vmem:[%s1 + $0x8] sm:$0xff]
    %v40 = vld [vmem:[%s1 + $0x10] sm:$0xff]
    %v41 = vld [vmem:[%s1 + $0x18] sm:$0xff]
    %v42 = vld [vmem:[%s1 + $0x20] sm:$0xff]
    %v43 = vld [vmem:[%s1 + $0x28] sm:$0xff]
    %v44 = vld [vmem:[%s1 + $0x30] sm:$0xff]
    %v45 = vld [vmem:[%s1 + $0x38] sm:$0xff]
    %v46 = vld [vmem:[%s2] sm:$0xff]
    %v47 = vld [vmem:[%s2 + $0x8] sm:$0xff]
    %v48 = vld [vmem:[%s2 + $0x10] sm:$0xff]
    %v49 = vld [vmem:[%s2 + $0x18] sm:$0xff]
    %v50 = vld [vmem:[%s2 + $0x20] sm:$0xff]
    %v51 = vld [vmem:[%s2 + $0x28] sm:$0xff]
    %v52 = vld [vmem:[%s2 + $0x30] sm:$0xff]
    %v53 = vld [vmem:[%s2 + $0x38] sm:$0xff]
    %55 = vset.pattern.permute.xlu0 0
    %56 = vperm.xlu0 %55, %v46
    %v57 = vpop.permute.xlu0 %56
    %60 = vset.pattern.permute.xlu0 0
    %61 = vperm.xlu0 %60, %v47
    %v62 = vpop.permute.xlu0 %61
    %65 = vset.pattern.permute.xlu0 0
    %66 = vperm.xlu0 %65, %v48
    %v67 = vpop.permute.xlu0 %66
    %70 = vset.pattern.permute.xlu0 0
    %71 = vperm.xlu0 %70, %v49
    %v72 = vpop.permute.xlu0 %71
    %75 = vset.pattern.permute.xlu0 0
    %76 = vperm.xlu0 %75, %v50
    %v77 = vpop.permute.xlu0 %76
    %80 = vset.pattern.permute.xlu0 0
    %81 = vperm.xlu0 %80, %v51
    %v82 = vpop.permute.xlu0 %81
    %85 = vset.pattern.permute.xlu0 0
    %86 = vperm.xlu0 %85, %v52
    %v87 = vpop.permute.xlu0 %86
    %90 = vset.pattern.permute.xlu0 0
    %91 = vperm.xlu0 %90, %v53
    %v92 = vpop.permute.xlu0 %91
    %vm94 = vcmask 64512
    %v96 = vsel %vm94, %v38, 0
    %v99 = vsel %vm94, %v39, 0
    %v102 = vsel %vm94, %v40, 0
    %v105 = vsel %vm94, %v41, 0
    %v108 = vsel %vm94, %v42, 0
    %v111 = vsel %vm94, %v43, 0
    %v114 = vsel %vm94, %v44, 0
    %v117 = vsel %vm94, %v45, 0
    %v120 = vsel %vm94, %v37, 0
    %122 = vmatprep.subr.mxu0 0.0
    %123 = vmatpush1.xpose.msra.mxu0 0.0
    %124 = vmatprep.subr.mxu0 0.0
    %125 = vmatpush1.xpose.msra.mxu0 0.0
    %126 = vmatprep.subr.mxu0 0.0
    %127 = vmatpush1.xpose.msra.mxu0 0.0
    %128 = vmatprep.subr.mxu0 0.0
    %129 = vmatpush1.xpose.msra.mxu0 0.0
    %130 = vmatprep.subr.mxu0 0.0
    %131 = vmatpush1.xpose.msra.mxu0 0.0
    %132 = vmatprep.subr.mxu0 0.0
    %133 = vmatpush1.xpose.msra.mxu0 0.0
    %134 = vmatprep.subr.mxu0 0.0
    %135 = vmatpush1.xpose.msra.mxu0 0.0
    %136 = vmatprep.subr.mxu0 0.0
    %137 = vmatpush1.xpose.msra.mxu0 0.0
    %138 = vmatprep.subr.mxu0 0.0
    %139 = vmatpush1.xpose.msra.mxu0 0.0
    %140 = vmatprep.subr.mxu0 0.0
    %141 = vmatpush1.xpose.msra.mxu0 0.0
    %142 = vmatprep.subr.mxu0 0.0
    %143 = vmatpush1.xpose.msra.mxu0 0.0
    %144 = vmatprep.subr.mxu0 0.0
    %145 = vmatpush1.xpose.msra.mxu0 0.0
    %146 = vmatprep.subr.mxu0 0.0
    %147 = vmatpush1.xpose.msra.mxu0 0.0
    %148 = vmatprep.subr.mxu0 0.0
    %149 = vmatpush1.xpose.msra.mxu0 0.0
    %150 = vmatprep.subr.mxu0 0.0
    %151 = vmatpush1.xpose.msra.mxu0 0.0
    %152 = vmatprep.subr.mxu0 0.0
    %153 = vmatpush1.xpose.msra.mxu0 %v120
    %154 = vmatprep.subr.mxu0 0.0
    %155 = vmatpush2.xpose.msra.mxu0 0.0
    %156 = vmatprep.subr.mxu0 0.0
    %157 = vmatpush2.xpose.msra.mxu0 0.0
    %158 = vmatprep.subr.mxu0 0.0
    %159 = vmatpush2.xpose.msra.mxu0 0.0
    %160 = vmatprep.subr.mxu0 0.0
    %161 = vmatpush2.xpose.msra.mxu0 0.0
    %162 = vmatprep.subr.mxu0 0.0
    %163 = vmatpush2.xpose.msra.mxu0 0.0
    %164 = vmatprep.subr.mxu0 0.0
    %165 = vmatpush2.xpose.msra.mxu0 0.0
    %166 = vmatprep.subr.mxu0 0.0
    %167 = vmatpush2.xpose.msra.mxu0 0.0
    %168 = vmatprep.subr.mxu0 0.0
    %169 = vmatpush2.xpose.msra.mxu0 0.0
    %170 = vmatprep.subr.mxu0 0.0
    %171 = vmatpush2.xpose.msra.mxu0 0.0
    %172 = vmatprep.subr.mxu0 0.0
    %173 = vmatpush2.xpose.msra.mxu0 0.0
    %174 = vmatprep.subr.mxu0 0.0
    %175 = vmatpush2.xpose.msra.mxu0 0.0
    %176 = vmatprep.subr.mxu0 0.0
    %177 = vmatpush2.xpose.msra.mxu0 0.0
    %178 = vmatprep.subr.mxu0 0.0
    %179 = vmatpush2.xpose.msra.mxu0 0.0
    %180 = vmatprep.subr.mxu0 0.0
    %181 = vmatpush2.xpose.msra.mxu0 0.0
    %182 = vmatprep.subr.mxu0 0.0
    %183 = vmatpush2.xpose.msra.mxu0 0.0
    %184 = vmatprep.subr.mxu0 0.0
    %185 = vmatpush2.xpose.msra.mxu0 0.0
    %186 = vmatprep.mubr.f32.mxu0 0.0
    %187 = vmatmul.mubr.f32.gmra.mxu0 %v96
    %v188 = vpop.f32.mrf.mxu0
    %v189 = vadd.f32 %v57, %v188
    %v190 = vpop.f32.mrf.mxu0
    %191 = vmatprep.mubr.f32.mxu0 0.0
    %192 = vmatmul.mubr.f32.gmra.mxu0 %v99
    %v193 = vpop.f32.mrf.mxu0
    %v194 = vadd.f32 %v62, %v193
    %v195 = vpop.f32.mrf.mxu0
    %196 = vmatprep.mubr.f32.mxu0 0.0
    %197 = vmatmul.mubr.f32.gmra.mxu0 %v102
    %v198 = vpop.f32.mrf.mxu0
    %v199 = vadd.f32 %v67, %v198
    %v200 = vpop.f32.mrf.mxu0
    %201 = vmatprep.mubr.f32.mxu0 0.0
    %202 = vmatmul.mubr.f32.gmra.mxu0 %v105
    %v203 = vpop.f32.mrf.mxu0
    %v204 = vadd.f32 %v72, %v203
    %v205 = vpop.f32.mrf.mxu0
    %206 = vmatprep.mubr.f32.mxu0 0.0
    %207 = vmatmul.mubr.f32.gmra.mxu0 %v108
    %v208 = vpop.f32.mrf.mxu0
    %v209 = vadd.f32 %v77, %v208
    %v210 = vpop.f32.mrf.mxu0
    %211 = vmatprep.mubr.f32.mxu0 0.0
    %212 = vmatmul.mubr.f32.gmra.mxu0 %v111
    %v213 = vpop.f32.mrf.mxu0
    %v214 = vadd.f32 %v82, %v213
    %v215 = vpop.f32.mrf.mxu0
    %216 = vmatprep.mubr.f32.mxu0 0.0
    %217 = vmatmul.mubr.f32.gmra.mxu0 %v114
    %v218 = vpop.f32.mrf.mxu0
    %v219 = vadd.f32 %v87, %v218
    %v220 = vpop.f32.mrf.mxu0
    %221 = vmatprep.mubr.f32.mxu0 0.0
    %222 = vmatmul.mubr.f32.gmra.mxu0 %v117
    %v223 = vpop.f32.mrf.mxu0
    %v224 = vadd.f32 %v92, %v223
    %v225 = vpop.f32.mrf.mxu0
    %226 = vdwg.mxu0
    %v227 = vmax.f32 %v189, 0.0
    %v228 = vmax.f32 %v194, 0.0
    %v229 = vmax.f32 %v199, 0.0
    %v230 = vmax.f32 %v204, 0.0
    %v231 = vmax.f32 %v209, 0.0
    %v232 = vmax.f32 %v214, 0.0
    %v233 = vmax.f32 %v219, 0.0
    %v234 = vmax.f32 %v224, 0.0
    %v235 = vld [vmem:[%s3] sm:$0xff]
    %v236 = vld [vmem:[%s3 + $0x8] sm:$0xff]
    %v237 = vld [vmem:[%s3 + $0x10] sm:$0xff]
    %v238 = vld [vmem:[%s3 + $0x18] sm:$0xff]
    %v239 = vld [vmem:[%s3 + $0x20] sm:$0xff]
    %v240 = vld [vmem:[%s3 + $0x28] sm:$0xff]
    %v241 = vld [vmem:[%s3 + $0x30] sm:$0xff]
    %v242 = vld [vmem:[%s3 + $0x38] sm:$0xff]
    %v243 = vld [vmem:[%s4] sm:$0xff]
    %v244 = vld [vmem:[%s4 + $0x8] sm:$0xff]
    %v245 = vld [vmem:[%s4 + $0x10] sm:$0xff]
    %v246 = vld [vmem:[%s4 + $0x18] sm:$0xff]
    %v247 = vld [vmem:[%s4 + $0x20] sm:$0xff]
    %v248 = vld [vmem:[%s4 + $0x28] sm:$0xff]
    %v249 = vld [vmem:[%s4 + $0x30] sm:$0xff]
    %v250 = vld [vmem:[%s4 + $0x38] sm:$0xff]
    %252 = vset.pattern.permute.xlu0 0
    %253 = vperm.xlu0 %252, %v243
    %v254 = vpop.permute.xlu0 %253
    %257 = vset.pattern.permute.xlu0 0
    %258 = vperm.xlu0 %257, %v244
    %v259 = vpop.permute.xlu0 %258
    %262 = vset.pattern.permute.xlu0 0
    %263 = vperm.xlu0 %262, %v245
    %v264 = vpop.permute.xlu0 %263
    %267 = vset.pattern.permute.xlu0 0
    %268 = vperm.xlu0 %267, %v246
    %v269 = vpop.permute.xlu0 %268
    %272 = vset.pattern.permute.xlu0 0
    %273 = vperm.xlu0 %272, %v247
    %v274 = vpop.permute.xlu0 %273
    %277 = vset.pattern.permute.xlu0 0
    %278 = vperm.xlu0 %277, %v248
    %v279 = vpop.permute.xlu0 %278
    %282 = vset.pattern.permute.xlu0 0
    %283 = vperm.xlu0 %282, %v249
    %v284 = vpop.permute.xlu0 %283
    %287 = vset.pattern.permute.xlu0 0
    %288 = vperm.xlu0 %287, %v250
    %v289 = vpop.permute.xlu0 %288
    %vm291 = vcmask 523264
    %v293 = vsel %vm291, %v235, 0
    %v296 = vsel %vm291, %v236, 0
    %v299 = vsel %vm291, %v237, 0
    %v302 = vsel %vm291, %v238, 0
    %v305 = vsel %vm291, %v239, 0
    %v308 = vsel %vm291, %v240, 0
    %v311 = vsel %vm291, %v241, 0
    %v314 = vsel %vm291, %v242, 0
    %316 = vmatprep.subr.mxu0 0.0
    %317 = vmatpush1.msra.mxu0 0.0
    %318 = vmatprep.subr.mxu0 0.0
    %319 = vmatpush1.msra.mxu0 0.0
    %320 = vmatprep.subr.mxu0 0.0
    %321 = vmatpush1.msra.mxu0 0.0
    %322 = vmatprep.subr.mxu0 0.0
    %323 = vmatpush1.msra.mxu0 0.0
    %324 = vmatprep.subr.mxu0 0.0
    %325 = vmatpush1.msra.mxu0 0.0
    %326 = vmatprep.subr.mxu0 0.0
    %327 = vmatpush1.msra.mxu0 0.0
    %328 = vmatprep.subr.mxu0 0.0
    %329 = vmatpush1.msra.mxu0 0.0
    %330 = vmatprep.subr.mxu0 0.0
    %331 = vmatpush1.msra.mxu0 0.0
    %332 = vmatprep.subr.mxu0 0.0
    %333 = vmatpush1.msra.mxu0 %v234
    %334 = vmatprep.subr.mxu0 0.0
    %335 = vmatpush1.msra.mxu0 %v233
    %336 = vmatprep.subr.mxu0 0.0
    %337 = vmatpush1.msra.mxu0 %v232
    %338 = vmatprep.subr.mxu0 0.0
    %339 = vmatpush1.msra.mxu0 %v231
    %340 = vmatprep.subr.mxu0 0.0
    %341 = vmatpush1.msra.mxu0 %v230
    %342 = vmatprep.subr.mxu0 0.0
    %343 = vmatpush1.msra.mxu0 %v229
    %344 = vmatprep.subr.mxu0 0.0
    %345 = vmatpush1.msra.mxu0 %v228
    %346 = vmatprep.subr.mxu0 0.0
    %347 = vmatpush1.msra.mxu0 %v227
    %348 = vmatprep.subr.mxu0 0.0
    %349 = vmatpush2.msra.mxu0 0.0
    %350 = vmatprep.subr.mxu0 0.0
    %351 = vmatpush2.msra.mxu0 0.0
    %352 = vmatprep.subr.mxu0 0.0
    %353 = vmatpush2.msra.mxu0 0.0
    %354 = vmatprep.subr.mxu0 0.0
    %355 = vmatpush2.msra.mxu0 0.0
    %356 = vmatprep.subr.mxu0 0.0
    %357 = vmatpush2.msra.mxu0 0.0
    %358 = vmatprep.subr.mxu0 0.0
    %359 = vmatpush2.msra.mxu0 0.0
    %360 = vmatprep.subr.mxu0 0.0
    %361 = vmatpush2.msra.mxu0 0.0
    %362 = vmatprep.subr.mxu0 0.0
    %363 = vmatpush2.msra.mxu0 0.0
    %364 = vmatprep.subr.mxu0 0.0
    %365 = vmatpush2.msra.mxu0 0.0
    %366 = vmatprep.subr.mxu0 0.0
    %367 = vmatpush2.msra.mxu0 0.0
    %368 = vmatprep.subr.mxu0 0.0
    %369 = vmatpush2.msra.mxu0 0.0
    %370 = vmatprep.subr.mxu0 0.0
    %371 = vmatpush2.msra.mxu0 0.0
    %372 = vmatprep.subr.mxu0 0.0
    %373 = vmatpush2.msra.mxu0 0.0
    %374 = vmatprep.subr.mxu0 0.0
    %375 = vmatpush2.msra.mxu0 0.0
    %376 = vmatprep.subr.mxu0 0.0
    %377 = vmatpush2.msra.mxu0 0.0
    %378 = vmatprep.subr.mxu0 0.0
    %379 = vmatpush2.msra.mxu0 0.0
    %380 = vmatprep.mubr.f32.mxu0 0.0
    %381 = vmatmul.mubr.f32.gmra.mxu0 %v293
    %v382 = vpop.f32.mrf.mxu0
    %v383 = vadd.f32 %v254, %v382
    %v384 = vpop.f32.mrf.mxu0
    %385 = vmatprep.mubr.f32.mxu0 0.0
    %386 = vmatmul.mubr.f32.gmra.mxu0 %v296
    %v387 = vpop.f32.mrf.mxu0
    %v388 = vadd.f32 %v259, %v387
    %v389 = vpop.f32.mrf.mxu0
    %390 = vmatprep.mubr.f32.mxu0 0.0
    %391 = vmatmul.mubr.f32.gmra.mxu0 %v299
    %v392 = vpop.f32.mrf.mxu0
    %v393 = vadd.f32 %v264, %v392
    %v394 = vpop.f32.mrf.mxu0
    %395 = vmatprep.mubr.f32.mxu0 0.0
    %396 = vmatmul.mubr.f32.gmra.mxu0 %v302
    %v397 = vpop.f32.mrf.mxu0
    %v398 = vadd.f32 %v269, %v397
    %v399 = vpop.f32.mrf.mxu0
    %400 = vmatprep.mubr.f32.mxu0 0.0
    %401 = vmatmul.mubr.f32.gmra.mxu0 %v305
    %v402 = vpop.f32.mrf.mxu0
    %v403 = vadd.f32 %v274, %v402
    %v404 = vpop.f32.mrf.mxu0
    %405 = vmatprep.mubr.f32.mxu0 0.0
    %406 = vmatmul.mubr.f32.gmra.mxu0 %v308
    %v407 = vpop.f32.mrf.mxu0
    %v408 = vadd.f32 %v279, %v407
    %v409 = vpop.f32.mrf.mxu0
    %410 = vmatprep.mubr.f32.mxu0 0.0
    %411 = vmatmul.mubr.f32.gmra.mxu0 %v311
    %v412 = vpop.f32.mrf.mxu0
    %v413 = vadd.f32 %v284, %v412
    %v414 = vpop.f32.mrf.mxu0
    %415 = vmatprep.mubr.f32.mxu0 0.0
    %416 = vmatmul.mubr.f32.gmra.mxu0 %v314
    %v417 = vpop.f32.mrf.mxu0
    %v418 = vadd.f32 %v289, %v417
    %v419 = vpop.f32.mrf.mxu0
    %420 = vdwg.mxu0
    %v421 = vmax.f32 %v383, 0.0
    %v422 = vmax.f32 %v388, 0.0
    %v423 = vmax.f32 %v393, 0.0
    %v424 = vmax.f32 %v398, 0.0
    %v425 = vmax.f32 %v403, 0.0
    %v426 = vmax.f32 %v408, 0.0
    %v427 = vmax.f32 %v413, 0.0
    %v428 = vmax.f32 %v418, 0.0
    %v429 = vld [vmem:[%s5] sm:$0xff]
    %v430 = vld [vmem:[%s5 + $0x8] sm:$0xff]
    %v431 = vld [vmem:[%s5 + $0x10] sm:$0xff]
    %v432 = vld [vmem:[%s5 + $0x18] sm:$0xff]
    %v433 = vld [vmem:[%s5 + $0x20] sm:$0xff]
    %v434 = vld [vmem:[%s5 + $0x28] sm:$0xff]
    %v435 = vld [vmem:[%s5 + $0x30] sm:$0xff]
    %v436 = vld [vmem:[%s5 + $0x38] sm:$0xff]
    %v437 = vld [vmem:[%s6] sm:$0xff]
    %v438 = vld [vmem:[%s6 + $0x8] sm:$0xff]
    %v439 = vld [vmem:[%s6 + $0x10] sm:$0xff]
    %v440 = vld [vmem:[%s6 + $0x18] sm:$0xff]
    %v441 = vld [vmem:[%s6 + $0x20] sm:$0xff]
    %v442 = vld [vmem:[%s6 + $0x28] sm:$0xff]
    %v443 = vld [vmem:[%s6 + $0x30] sm:$0xff]
    %v444 = vld [vmem:[%s6 + $0x38] sm:$0xff]
    %446 = vset.pattern.permute.xlu0 0
    %447 = vperm.xlu0 %446, %v437
    %v448 = vpop.permute.xlu0 %447
    %451 = vset.pattern.permute.xlu0 0
    %452 = vperm.xlu0 %451, %v438
    %v453 = vpop.permute.xlu0 %452
    %456 = vset.pattern.permute.xlu0 0
    %457 = vperm.xlu0 %456, %v439
    %v458 = vpop.permute.xlu0 %457
    %461 = vset.pattern.permute.xlu0 0
    %462 = vperm.xlu0 %461, %v440
    %v463 = vpop.permute.xlu0 %462
    %466 = vset.pattern.permute.xlu0 0
    %467 = vperm.xlu0 %466, %v441
    %v468 = vpop.permute.xlu0 %467
    %471 = vset.pattern.permute.xlu0 0
    %472 = vperm.xlu0 %471, %v442
    %v473 = vpop.permute.xlu0 %472
    %476 = vset.pattern.permute.xlu0 0
    %477 = vperm.xlu0 %476, %v443
    %v478 = vpop.permute.xlu0 %477
    %481 = vset.pattern.permute.xlu0 0
    %482 = vperm.xlu0 %481, %v444
    %v483 = vpop.permute.xlu0 %482
    %v486 = vsel %vm291, %v429, 0
    %v489 = vsel %vm291, %v430, 0
    %v492 = vsel %vm291, %v431, 0
    %v495 = vsel %vm291, %v432, 0
    %v498 = vsel %vm291, %v433, 0
    %v501 = vsel %vm291, %v434, 0
    %v504 = vsel %vm291, %v435, 0
    %v507 = vsel %vm291, %v436, 0
    %509 = vmatprep.subr.mxu0 0.0
    %510 = vmatpush1.msra.mxu0 0.0
    %511 = vmatprep.subr.mxu0 0.0
    %512 = vmatpush1.msra.mxu0 0.0
    %513 = vmatprep.subr.mxu0 0.0
    %514 = vmatpush1.msra.mxu0 0.0
    %515 = vmatprep.subr.mxu0 0.0
    %516 = vmatpush1.msra.mxu0 0.0
    %517 = vmatprep.subr.mxu0 0.0
    %518 = vmatpush1.msra.mxu0 0.0
    %519 = vmatprep.subr.mxu0 0.0
    %520 = vmatpush1.msra.mxu0 0.0
    %521 = vmatprep.subr.mxu0 0.0
    %522 = vmatpush1.msra.mxu0 0.0
    %523 = vmatprep.subr.mxu0 0.0
    %524 = vmatpush1.msra.mxu0 0.0
    %525 = vmatprep.subr.mxu0 0.0
    %526 = vmatpush1.msra.mxu0 %v428
    %527 = vmatprep.subr.mxu0 0.0
    %528 = vmatpush1.msra.mxu0 %v427
    %529 = vmatprep.subr.mxu0 0.0
    %530 = vmatpush1.msra.mxu0 %v426
    %531 = vmatprep.subr.mxu0 0.0
    %532 = vmatpush1.msra.mxu0 %v425
    %533 = vmatprep.subr.mxu0 0.0
    %534 = vmatpush1.msra.mxu0 %v424
    %535 = vmatprep.subr.mxu0 0.0
    %536 = vmatpush1.msra.mxu0 %v423
    %537 = vmatprep.subr.mxu0 0.0
    %538 = vmatpush1.msra.mxu0 %v422
    %539 = vmatprep.subr.mxu0 0.0
    %540 = vmatpush1.msra.mxu0 %v421
    %541 = vmatprep.subr.mxu0 0.0
    %542 = vmatpush2.msra.mxu0 0.0
    %543 = vmatprep.subr.mxu0 0.0
    %544 = vmatpush2.msra.mxu0 0.0
    %545 = vmatprep.subr.mxu0 0.0
    %546 = vmatpush2.msra.mxu0 0.0
    %547 = vmatprep.subr.mxu0 0.0
    %548 = vmatpush2.msra.mxu0 0.0
    %549 = vmatprep.subr.mxu0 0.0
    %550 = vmatpush2.msra.mxu0 0.0
    %551 = vmatprep.subr.mxu0 0.0
    %552 = vmatpush2.msra.mxu0 0.0
    %553 = vmatprep.subr.mxu0 0.0
    %554 = vmatpush2.msra.mxu0 0.0
    %555 = vmatprep.subr.mxu0 0.0
    %556 = vmatpush2.msra.mxu0 0.0
    %557 = vmatprep.subr.mxu0 0.0
    %558 = vmatpush2.msra.mxu0 0.0
    %559 = vmatprep.subr.mxu0 0.0
    %560 = vmatpush2.msra.mxu0 0.0
    %561 = vmatprep.subr.mxu0 0.0
    %562 = vmatpush2.msra.mxu0 0.0
    %563 = vmatprep.subr.mxu0 0.0
    %564 = vmatpush2.msra.mxu0 0.0
    %565 = vmatprep.subr.mxu0 0.0
    %566 = vmatpush2.msra.mxu0 0.0
    %567 = vmatprep.subr.mxu0 0.0
    %568 = vmatpush2.msra.mxu0 0.0
    %569 = vmatprep.subr.mxu0 0.0
    %570 = vmatpush2.msra.mxu0 0.0
    %571 = vmatprep.subr.mxu0 0.0
    %572 = vmatpush2.msra.mxu0 0.0
    %573 = vmatprep.mubr.f32.mxu0 0.0
    %574 = vmatmul.mubr.f32.gmra.mxu0 %v486
    %v575 = vpop.f32.mrf.mxu0
    %v576 = vadd.f32 %v448, %v575
    %v577 = vpop.f32.mrf.mxu0
    %578 = vmatprep.mubr.f32.mxu0 0.0
    %579 = vmatmul.mubr.f32.gmra.mxu0 %v489
    %v580 = vpop.f32.mrf.mxu0
    %v581 = vadd.f32 %v453, %v580
    %v582 = vpop.f32.mrf.mxu0
    %583 = vmatprep.mubr.f32.mxu0 0.0
    %584 = vmatmul.mubr.f32.gmra.mxu0 %v492
    %v585 = vpop.f32.mrf.mxu0
    %v586 = vadd.f32 %v458, %v585
    %v587 = vpop.f32.mrf.mxu0
    %588 = vmatprep.mubr.f32.mxu0 0.0
    %589 = vmatmul.mubr.f32.gmra.mxu0 %v495
    %v590 = vpop.f32.mrf.mxu0
    %v591 = vadd.f32 %v463, %v590
    %v592 = vpop.f32.mrf.mxu0
    %593 = vmatprep.mubr.f32.mxu0 0.0
    %594 = vmatmul.mubr.f32.gmra.mxu0 %v498
    %v595 = vpop.f32.mrf.mxu0
    %v596 = vadd.f32 %v468, %v595
    %v597 = vpop.f32.mrf.mxu0
    %598 = vmatprep.mubr.f32.mxu0 0.0
    %599 = vmatmul.mubr.f32.gmra.mxu0 %v501
    %v600 = vpop.f32.mrf.mxu0
    %v601 = vadd.f32 %v473, %v600
    %v602 = vpop.f32.mrf.mxu0
    %603 = vmatprep.mubr.f32.mxu0 0.0
    %604 = vmatmul.mubr.f32.gmra.mxu0 %v504
    %v605 = vpop.f32.mrf.mxu0
    %v606 = vadd.f32 %v478, %v605
    %v607 = vpop.f32.mrf.mxu0
    %608 = vmatprep.mubr.f32.mxu0 0.0
    %609 = vmatmul.mubr.f32.gmra.mxu0 %v507
    %v610 = vpop.f32.mrf.mxu0
    %v611 = vadd.f32 %v483, %v610
    %v612 = vpop.f32.mrf.mxu0
    %613 = vdwg.mxu0
    %v614 = vtanh.pop %v576
    %v615 = vtanh.pop %v581
    %v616 = vtanh.pop %v586
    %v617 = vtanh.pop %v591
    %v618 = vtanh.pop %v596
    %v619 = vtanh.pop %v601
    %v620 = vtanh.pop %v606
    %v621 = vtanh.pop %v611
    %v622 = vld [vmem:[%s7] sm:$0xff]
    %v623 = vld [vmem:[%s8] sm:$0xff]
    %625 = vset.pattern.permute.xlu0 0
    %626 = vperm.xlu0 %625, %v623
    %v627 = vpop.permute.xlu0 %626
    %v630 = vsel %vm291, %v622, 0
    %632 = vmatprep.subr.mxu0 0.0
    %633 = vmatpush1.msra.mxu0 0.0
    %634 = vmatprep.subr.mxu0 0.0
    %635 = vmatpush1.msra.mxu0 0.0
    %636 = vmatprep.subr.mxu0 0.0
    %637 = vmatpush1.msra.mxu0 0.0
    %638 = vmatprep.subr.mxu0 0.0
    %639 = vmatpush1.msra.mxu0 0.0
    %640 = vmatprep.subr.mxu0 0.0
    %641 = vmatpush1.msra.mxu0 0.0
    %642 = vmatprep.subr.mxu0 0.0
    %643 = vmatpush1.msra.mxu0 0.0
    %644 = vmatprep.subr.mxu0 0.0
    %645 = vmatpush1.msra.mxu0 0.0
    %646 = vmatprep.subr.mxu0 0.0
    %647 = vmatpush1.msra.mxu0 0.0
    %648 = vmatprep.subr.mxu0 0.0
    %649 = vmatpush1.msra.mxu0 %v621
    %650 = vmatprep.subr.mxu0 0.0
    %651 = vmatpush1.msra.mxu0 %v620
    %652 = vmatprep.subr.mxu0 0.0
    %653 = vmatpush1.msra.mxu0 %v619
    %654 = vmatprep.subr.mxu0 0.0
    %655 = vmatpush1.msra.mxu0 %v618
    %656 = vmatprep.subr.mxu0 0.0
    %657 = vmatpush1.msra.mxu0 %v617
    %658 = vmatprep.subr.mxu0 0.0
    %659 = vmatpush1.msra.mxu0 %v616
    %660 = vmatprep.subr.mxu0 0.0
    %661 = vmatpush1.msra.mxu0 %v615
    %662 = vmatprep.subr.mxu0 0.0
    %663 = vmatpush1.msra.mxu0 %v614
    %664 = vmatprep.subr.mxu0 0.0
    %665 = vmatpush2.msra.mxu0 0.0
    %666 = vmatprep.subr.mxu0 0.0
    %667 = vmatpush2.msra.mxu0 0.0
    %668 = vmatprep.subr.mxu0 0.0
    %669 = vmatpush2.msra.mxu0 0.0
    %670 = vmatprep.subr.mxu0 0.0
    %671 = vmatpush2.msra.mxu0 0.0
    %672 = vmatprep.subr.mxu0 0.0
    %673 = vmatpush2.msra.mxu0 0.0
    %674 = vmatprep.subr.mxu0 0.0
    %675 = vmatpush2.msra.mxu0 0.0
    %676 = vmatprep.subr.mxu0 0.0
    %677 = vmatpush2.msra.mxu0 0.0
    %678 = vmatprep.subr.mxu0 0.0
    %679 = vmatpush2.msra.mxu0 0.0
    %680 = vmatprep.subr.mxu0 0.0
    %681 = vmatpush2.msra.mxu0 0.0
    %682 = vmatprep.subr.mxu0 0.0
    %683 = vmatpush2.msra.mxu0 0.0
    %684 = vmatprep.subr.mxu0 0.0
    %685 = vmatpush2.msra.mxu0 0.0
    %686 = vmatprep.subr.mxu0 0.0
    %687 = vmatpush2.msra.mxu0 0.0
    %688 = vmatprep.subr.mxu0 0.0
    %689 = vmatpush2.msra.mxu0 0.0
    %690 = vmatprep.subr.mxu0 0.0
    %691 = vmatpush2.msra.mxu0 0.0
    %692 = vmatprep.subr.mxu0 0.0
    %693 = vmatpush2.msra.mxu0 0.0
    %694 = vmatprep.subr.mxu0 0.0
    %695 = vmatpush2.msra.mxu0 0.0
    %696 = vmatprep.mubr.f32.mxu0 0.0
    %697 = vmatmul.mubr.f32.gmra.mxu0 %v630
    %v698 = vpop.f32.mrf.mxu0
    %v699 = vadd.f32 %v627, %v698
    %v700 = vpop.f32.mrf.mxu0
    %701 = vdwg.mxu0
    %702 = vst.msk [vmem:[#allocation2] sm:$0xff] %vm94, %v699
    %v703 = vsel %vm94, %v699, -inf
    %v704 = vrot.slane %v703, 4
    %v705 = vmax.f32 %v703, %v704
    %v706 = vrot.slane %v705, 2
    %v707 = vmax.f32 %v705, %v706
    %v708 = vrot.slane %v707, 1
    %v709 = vmax.f32 %v707, %v708
    %v710 = vlaneseq
    %v711 = vshrl.u32 %v710, 7
    %vm712 = vcmp.eq.f32.partialorder %v699, %v709
    %v713 = vsel %vm712, %v711, 8
    %v714 = vsel %vm94, %v713, 2147483647
    %v715 = vrot.slane %v714, 4
    %vm716 = vcmp.lt.s32.totalorder %v714, %v715
    %v717 = vsel %vm716, %v714, %v715
    %v718 = vrot.slane %v717, 2
    %vm719 = vcmp.lt.s32.totalorder %v717, %v718
    %v720 = vsel %vm719, %v717, %v718
    %v721 = vrot.slane %v720, 1
    %vm722 = vcmp.lt.s32.totalorder %v720, %v721
    %v723 = vsel %vm722, %v720, %v721
    %vm724 = vcmask 57344
    %725 = vst.msk [vmem:[#allocation4] sm:$0x1] %vm724, %v709
    %726 = vst.msk [vmem:[#allocation6] sm:$0x1] %vm724, %v723
    // Predicated region
    $region38: #{tpu_custom_call.1} parent=1 // pred_check
      _
    $region39: #{tpu_custom_call.1} parent=1 // pred_check_branch
      %728 = sbr.rel (0) target = $region41
    $region40: #{tpu_custom_call.1} parent=1 // pred_region
      %s730 = ssub.s32 128, 128
      %731 = vsyncadd [#allocation3], %s730
      %s733 = sshll.u32 [#allocation2], 4
      %s734 = int_to_ptr.vmem [resolvable:$true] %s733
      %736 = dma.vmem_to_hbm [thread:$0]  %s734, 128, %s9, [#allocation3]
    $region41: #{tpu_custom_call.1} parent=1 // pred_fallthru
      _
    // Predicated region
    $region42: #{tpu_custom_call.1} parent=1 // pred_check
      _
    $region43: #{tpu_custom_call.1} parent=1 // pred_check_branch
      %738 = sbr.rel (0) target = $region45
    $region44: #{tpu_custom_call.1} parent=1 // pred_region
      %s740 = ssub.s32 16, 16
      %741 = vsyncadd [#allocation5], %s740
      %s743 = sshll.u32 [#allocation4], 4
      %s744 = int_to_ptr.vmem [resolvable:$true] %s743
      %746 = dma.vmem_to_hbm [thread:$0]  %s744, 16, %s10, [#allocation5]
    $region45: #{tpu_custom_call.1} parent=1 // pred_fallthru
      _
    // Predicated region
    $region46: #{tpu_custom_call.1} parent=1 // pred_check
      _
    $region47: #{tpu_custom_call.1} parent=1 // pred_check_branch
      %748 = sbr.rel (0) target = $region49
    $region48: #{tpu_custom_call.1} parent=1 // pred_region
      %s750 = ssub.s32 16, 16
      %751 = vsyncadd [#allocation5], %s750
      %s753 = sshll.u32 [#allocation6], 4
      %s754 = int_to_ptr.vmem [resolvable:$true] %s753
      %756 = dma.vmem_to_hbm [thread:$0]  %s754, 16, %s11, [#allocation5]
    $region49: #{tpu_custom_call.1} parent=1 // pred_fallthru
      _
    // Predicated region
    $region50: #{tpu_custom_call.1} parent=1 // pred_check
      _
    $region51: #{tpu_custom_call.1} parent=1 // pred_check_branch
      %758 = sbr.rel (0) target = $region53
    $region52: #{tpu_custom_call.1} parent=1 // pred_region
      %759 = dma.done [#allocation3], 128
    $region53: #{tpu_custom_call.1} parent=1 // pred_fallthru
      _
    // Predicated region
    $region54: #{tpu_custom_call.1} parent=1 // pred_check
      _
    $region55: #{tpu_custom_call.1} parent=1 // pred_check_branch
      %761 = sbr.rel (0) target = $region57
    $region56: #{tpu_custom_call.1} parent=1 // pred_region
      %762 = dma.done [#allocation5], 16
    $region57: #{tpu_custom_call.1} parent=1 // pred_fallthru
      _
    // Predicated region
    $region58: #{tpu_custom_call.1} parent=1 // pred_check
      _
    $region59: #{tpu_custom_call.1} parent=1 // pred_check_branch
      %764 = sbr.rel (0) target = $region61
    $region60: #{tpu_custom_call.1} parent=1 // pred_region
      %765 = dma.done [#allocation5], 16
    $region61: #{tpu_custom_call.1} parent=1 // pred_fallthru
      _
    %766 = vsyncpa [#allocation3], 1
    %767 = vsyncpa [#allocation5], 1

</llo_original>
